<compile_context>
chip_gen: v7x
topology: tpu7x:2x2x1
jax: 0.10.0
libtpu: 0.0.40
codegen_flags: <defaults>
</compile_context>

<pallas_src>
import jax
import jax.numpy as jnp
from jax.experimental import pallas as pl
from jax.experimental.pallas import tpu as pltpu


def _round_up(x, m):
    return (x + m - 1) // m * m


def _cdiv(a, b):
    return -(-a // b)


# dtype itemsize -> minimum sublane tile (rows) for that dtype.
_SUBLANE_UNIT = {4: 8, 2: 16, 1: 32}


def _fix_row_block(rb, unit):
    """Legal / group-friendly row block: multiple of `unit`; once it exceeds
    128 it must be a multiple of 128 so the in-kernel 128-row groups tile it
    exactly."""
    if rb <= 128:
        return max(unit, rb // unit * unit)
    return rb // 128 * 128


def _select_blocks(rows, cols, itemsize, unit, *, col_block, row_block_cap,
                   tile_target_bytes, max_col_slices):
    rows_pad = _round_up(rows, unit)
    # Column block: multiple of 128, no wider than the (rounded-up) data.
    cb = min(_round_up(cols, 128), _round_up(col_block, 128))
    # Row block: aim for ~tile_target_bytes per input per grid step.
    rb = max(unit, tile_target_bytes // (cb * itemsize))
    rb = min(rb, row_block_cap, rows_pad)
    rb = _fix_row_block(rb, unit)
    # v7x megacore: the row axis is "parallel"; ensure >= 2 tiles when possible
    # so both TensorCores stream (no-op on single-TC v5e/v6e).
    while _cdiv(rows, rb) < 2 and rb > unit:
        rb = _fix_row_block(max(unit, rb // 2), unit)
    # Small-row workloads: if the row block is pinned by B*C, widen the column
    # block instead so each grid step still moves a healthy number of bytes.
    if rb * cb * itemsize < tile_target_bytes:
        cb_want = _round_up(tile_target_bytes // (rb * itemsize), 128)
        cb = min(_round_up(cols, 128), 128 * max_col_slices, max(cb, cb_want))
    return rb, cb


def _make_wmse_kernel(rows, cols, rb, cb, rg):
    """Kernel closure. rows/cols are the true (unpadded) array dims; rb/cb the
    block dims; rg (<=128, divides rb) is the in-kernel row-group size."""
    n_groups = rb // rg
    n_slices = cb // 128
    mask_cols = (cols % cb) != 0      # static: only generate tail masks when
    mask_rows = (rows % rb) != 0      # the shape is actually unaligned

    def kernel(w_ref, p_ref, t_ref, o_ref):
        r = pl.program_id(0)          # row-tile index  ("parallel")
        c = pl.program_id(1)          # col-tile index  ("arbitrary", reduction)

        # Output block index ignores c -> the (8,128) partial stays resident
        # in VMEM across the whole reduction; init it on the first col tile.
        @pl.when(c == 0)
        def _():
            o_ref[...] = jnp.zeros_like(o_ref)

        # Hoisted iotas for tail masking (only built if statically needed).
        if mask_cols:
            col_pos = c * cb + jax.lax.broadcasted_iota(jnp.int32, (rg, 128), 1)
        if mask_rows:
            row_pos = r * rb + jax.lax.broadcasted_iota(jnp.int32, (rg, 128), 0)

        blk = jnp.zeros((8, 128), jnp.float32)
        for g in range(n_groups):                      # <=128-row groups
            r0 = g * rg
            panel = jnp.zeros((rg, 128), jnp.float32)
            for k in range(n_slices):                  # 128-lane column fold
                c0 = k * 128
                pk = p_ref[r0:r0 + rg, c0:c0 + 128].astype(jnp.float32)
                tk = t_ref[r0:r0 + rg, c0:c0 + 128].astype(jnp.float32)
                dk = pk - tk
                sq = dk * dk
                if mask_cols:
                    # valid iff c*cb + c0 + lane < cols  (zeroes OOB garbage)
                    sq = jnp.where(col_pos < cols - c0, sq, 0.0)
                panel = panel + sq
            # Per-row weight (rg,1) broadcast over the 128 lanes, once/group.
            panel = panel * w_ref[r0:r0 + rg, :]
            if mask_rows:
                # valid iff r*rb + r0 + row < rows  (zeroes OOB garbage rows)
                panel = jnp.where(row_pos < rows - r0, panel, 0.0)
            # Sublane fold down to one vreg-shaped (8,128) partial.
            for s in range(rg // 8):
                blk = blk + panel[s * 8:(s + 1) * 8, :]
        o_ref[...] += blk

    return kernel


def weighted_mse_loss(weight, predict, target, *,
                      col_block=4096, row_block_cap=2048,
                      tile_target_bytes=2 << 20, max_col_slices=128):
    """weight: (C,); predict/target: (B, C, N). Returns scalar float32 sum."""
    assert predict.shape == target.shape
    B, C, N = predict.shape
    rows, cols = B * C, N
    itemsize = jnp.dtype(predict.dtype).itemsize
    unit = _SUBLANE_UNIT.get(itemsize, 8)

    # Lane-dense 2-D views (free dim collapses) + tiny per-row f32 weight col.
    p2 = predict.reshape(rows, cols)
    t2 = target.reshape(rows, cols)
    w2 = jnp.broadcast_to(
        jnp.asarray(weight, jnp.float32).reshape(1, C), (B, C)
    ).reshape(rows, 1)

    rb, cb = _select_blocks(rows, cols, itemsize, unit,
                            col_block=col_block, row_block_cap=row_block_cap,
                            tile_target_bytes=tile_target_bytes,
                            max_col_slices=max_col_slices)
    n_row_tiles = _cdiv(rows, rb)
    n_col_tiles = _cdiv(cols, cb)
    rg = rb if rb <= 128 else 128      # in-kernel row-group size (vreg-safe)

    tile_bytes = rb * cb * itemsize
    # 2 streaming inputs x 2 pipeline buffers x tile + weight/out + headroom;
    # cap below v7x's 64 MiB physical VMEM so Mosaic scratch always fits.
    vmem_limit = int(min(max(4 * tile_bytes + (16 << 20), 32 << 20), 48 << 20))

    kernel = _make_wmse_kernel(rows, cols, rb, cb, rg)

    partials = pl.pallas_call(
        kernel,
        out_shape=jax.ShapeDtypeStruct((n_row_tiles * 8, 128), jnp.float32),
        grid_spec=pltpu.PrefetchScalarGridSpec(
            num_scalar_prefetch=0,
            grid=(n_row_tiles, n_col_tiles),
            in_specs=[
                pl.BlockSpec((rb, 1), lambda r, c: (r, 0)),    # per-row weight
                pl.BlockSpec((rb, cb), lambda r, c: (r, c)),   # predict tile
                pl.BlockSpec((rb, cb), lambda r, c: (r, c)),   # target tile
            ],
            out_specs=pl.BlockSpec((8, 128), lambda r, c: (r, 0)),
        ),
        compiler_params=pltpu.CompilerParams(
            dimension_semantics=("parallel", "arbitrary"),
            vmem_limit_bytes=vmem_limit,
        ),
        cost_estimate=pl.CostEstimate(
            flops=3 * rows * cols,
            transcendentals=0,
            bytes_accessed=(2 * rows * cols * itemsize
                            + n_col_tiles * rows * 4
                            + n_row_tiles * 8 * 128 * 4),
        ),
    )(w2, p2, t2)

    # Tiny final reduce of the per-row-tile vreg-shaped partials.
    return jnp.sum(partials)


if __name__ == "__main__":
    key = jax.random.PRNGKey(0)
    k_w, k_p, k_t = jax.random.split(key, 3)

    # Tile-aligned case (matches the module's (B, C, N) layout).
    B, C, N = 2, 4, 128
    weight = jax.random.uniform(k_w, (C,), dtype=jnp.float32)
    predict = jax.random.normal(k_p, (B, C, N), dtype=jnp.float32)
    target = jax.random.normal(k_t, (B, C, N), dtype=jnp.float32)

    loss = weighted_mse_loss(weight, predict, target)
    jax.block_until_ready(loss)
    ref = jnp.sum(weight.reshape(1, C, 1) * (predict - target) ** 2)
    assert jnp.allclose(loss, ref, rtol=1e-5, atol=1e-5), (loss, ref)

    # Ragged (non tile-aligned) case: exercises the in-kernel tail masking
    # that replaced the old wrapper-side jnp.pad (no extra HBM pass).
    B2, C2, N2 = 2, 3, 200
    w_r = jax.random.uniform(k_w, (C2,), dtype=jnp.float32)
    p_r = jax.random.normal(k_p, (B2, C2, N2), dtype=jnp.float32)
    t_r = jax.random.normal(k_t, (B2, C2, N2), dtype=jnp.float32)
    loss_r = weighted_mse_loss(w_r, p_r, t_r)
    jax.block_until_ready(loss_r)
    ref_r = jnp.sum(w_r.reshape(1, C2, 1) * (p_r - t_r) ** 2)
    assert jnp.allclose(loss_r, ref_r, rtol=1e-5, atol=1e-5), (loss_r, ref_r)

    print("KERNEL_OK")
</pallas_src>

<mosaic_0001>
module attributes {stable_mosaic.version = 11 : i64} {
  func.func @kernel(%arg0: i32, %arg1: i32, %arg2: memref<8x1xf32, #tpu.memory_space<vmem>>, %arg3: memref<8x128xf32, #tpu.memory_space<vmem>>, %arg4: memref<8x128xf32, #tpu.memory_space<vmem>>, %arg5: memref<8x128xf32, #tpu.memory_space<vmem>>) attributes {dimension_semantics = [#tpu.dimension_semantics<parallel>, #tpu.dimension_semantics<arbitrary>], iteration_bounds = array<i64: 1, 1>, scalar_prefetch = 0 : i64, scratch_operands = 0 : i64, tpu.core_type = #tpu.core_type<tc>, window_params = [{transform_indices = @transform_0, window_bounds = array<i64: 8, 1>}, {transform_indices = @transform_1, window_bounds = array<i64: 8, 128>}, {transform_indices = @transform_2, window_bounds = array<i64: 8, 128>}, {transform_indices = @transform_3, window_bounds = array<i64: 8, 128>}]} {
    %c0_i32 = arith.constant 0 : i32
    %0 = arith.cmpi eq, %arg1, %c0_i32 : i32
    %1 = arith.extui %0 : i1 to i32
    %c0_i32_0 = arith.constant 0 : i32
    %2 = arith.cmpi ne, %1, %c0_i32_0 : i32
    scf.if %2 {
      %cst_11 = arith.constant 0.000000e+00 : f32
      %17 = vector.broadcast %cst_11 : f32 to vector<8x128xf32>
      %c0_12 = arith.constant 0 : index
      %c0_13 = arith.constant 0 : index
      %18 = vector.load %arg5[%c0_12, %c0_13] : memref<8x128xf32, #tpu.memory_space<vmem>>, vector<8x128xf32>
      tpu.vector_store %arg5[%c0_12, %c0_13], %17 {strides = array<i32>} : memref<8x128xf32, #tpu.memory_space<vmem>>, vector<8x128xf32>,
    } else {
    }
    %cst = arith.constant 0.000000e+00 : f32
    %3 = vector.broadcast %cst : f32 to vector<8x128xf32>
    %cst_1 = arith.constant 0.000000e+00 : f32
    %4 = vector.broadcast %cst_1 : f32 to vector<8x128xf32>
    %c0 = arith.constant 0 : index
    %c0_2 = arith.constant 0 : index
    %5 = vector.load %arg3[%c0, %c0_2] : memref<8x128xf32, #tpu.memory_space<vmem>>, vector<8x128xf32>
    %c0_3 = arith.constant 0 : index
    %c0_4 = arith.constant 0 : index
    %6 = vector.load %arg4[%c0_3, %c0_4] : memref<8x128xf32, #tpu.memory_space<vmem>>, vector<8x128xf32>
    %7 = arith.subf %5, %6 : vector<8x128xf32>
    %8 = arith.mulf %7, %7 : vector<8x128xf32>
    %9 = arith.addf %4, %8 : vector<8x128xf32>
    %c0_5 = arith.constant 0 : index
    %c0_6 = arith.constant 0 : index
    %10 = vector.load %arg2[%c0_5, %c0_6] : memref<8x1xf32, #tpu.memory_space<vmem>>, vector<8x1xf32>
    %11 = vector.broadcast %10 : vector<8x1xf32> to vector<8x128xf32>
    %12 = arith.mulf %9, %11 : vector<8x128xf32>
    %13 = arith.addf %3, %12 : vector<8x128xf32>
    %c0_7 = arith.constant 0 : index
    %c0_8 = arith.constant 0 : index
    %14 = vector.load %arg5[%c0_7, %c0_8] : memref<8x128xf32, #tpu.memory_space<vmem>>, vector<8x128xf32>
    %15 = arith.addf %14, %13 : vector<8x128xf32>
    %c0_9 = arith.constant 0 : index
    %c0_10 = arith.constant 0 : index
    %16 = vector.load %arg5[%c0_9, %c0_10] : memref<8x128xf32, #tpu.memory_space<vmem>>, vector<8x128xf32>
    tpu.vector_store %arg5[%c0_9, %c0_10], %15 {strides = array<i32>} : memref<8x128xf32, #tpu.memory_space<vmem>>, vector<8x128xf32>,
    return
  }
  func.func @transform_0(%arg0: i32, %arg1: i32) -> (i32, i32) {
    %c0_i32 = arith.constant 0 : i32
    %c0_i32_0 = arith.constant 0 : i32
    return %arg0, %c0_i32 : i32, i32
  }
  func.func @transform_1(%arg0: i32, %arg1: i32) -> (i32, i32) {
    %c0_i32 = arith.constant 0 : i32
    return %arg0, %arg1 : i32, i32
  }
  func.func @transform_2(%arg0: i32, %arg1: i32) -> (i32, i32) {
    %c0_i32 = arith.constant 0 : i32
    return %arg0, %arg1 : i32, i32
  }
  func.func @transform_3(%arg0: i32, %arg1: i32) -> (i32, i32) {
    %c0_i32 = arith.constant 0 : i32
    %c0_i32_0 = arith.constant 0 : i32
    return %arg0, %c0_i32 : i32, i32
  }
}

</mosaic_0001>

<llo_original>
// kernel: tpu_custom_call.1
$region0: #{tpu_custom_call.1}
  #allocation0 [shape = 'u32[]', space=smem, size = 0x4, offset = 0x4, fixed_abs, tag = 'smem constant byte address 0x4 - core index']
  #allocation1 [shape = 'u32[144,128]{1,0:T(1,128)}', space=vmem, size = 0x12000, scoped, tag = 'internal scratch']
  %s0 = inlined_call_operand.vmem [shape: f32[8,1], index: 0, kind: input, shape index: {}]
  %s1 = inlined_call_operand.vmem [shape: f32[8,128], index: 1, kind: input, shape index: {}]
  %s2 = inlined_call_operand.vmem [shape: f32[8,128], index: 2, kind: input, shape index: {}]
  %s3 = inlined_call_operand.hbm [shape: f32[8,128], index: 3, kind: output, shape index: {}]
  %s4 = sld [smem:[#allocation0]]
  $region26: #{tpu_custom_call.1} parent=0
    _
  %s6 = ssub.s32 1, %s4
  %s7 = scalar_select 0, %s6, %s4
  $region1: #{tpu_custom_call.1} parent=0
    #allocation2 [shape = 'u8[4096]{0}', space=vmem, size = 0x1000, scoped, tag = 'output window, operand 0, single buffered']
    #allocation3 [shape = 's32[1]{0}', space=sflag, size = 0x4, scoped, tag = 'scoped memory for tpu_custom_call.1']
    %8 = vsyncpa [#allocation3], 0
    // Predicated region
    $region2: #{tpu_custom_call.1} parent=1 // pred_check
      _
    $region3: #{tpu_custom_call.1} parent=1 // pred_check_branch
      %10 = sbr.rel (0) target = $region5
    $region4: #{tpu_custom_call.1} parent=1 // pred_region
      _
    $region5: #{tpu_custom_call.1} parent=1 // pred_fallthru
      _
    // Predicated region
    $region6: #{tpu_custom_call.1} parent=1 // pred_check
      _
    $region7: #{tpu_custom_call.1} parent=1 // pred_check_branch
      %12 = sbr.rel (0) target = $region9
    $region8: #{tpu_custom_call.1} parent=1 // pred_region
      _
    $region9: #{tpu_custom_call.1} parent=1 // pred_fallthru
      _
    // Predicated region
    $region10: #{tpu_custom_call.1} parent=1 // pred_check
      _
    $region11: #{tpu_custom_call.1} parent=1 // pred_check_branch
      %14 = sbr.rel (0) target = $region13
    $region12: #{tpu_custom_call.1} parent=1 // pred_region
      _
    $region13: #{tpu_custom_call.1} parent=1 // pred_fallthru
      _
    %p15 = scmp.eq.s32.totalorder 0, 0
    // Predicated region
    $region14: #{tpu_custom_call.1} parent=1 // pred_check
      %p16 = pneg %p15
    $region15: #{tpu_custom_call.1} parent=1 // pred_check_branch
      %18 = sbr.rel (%p16) target = $region17
    $region16: #{tpu_custom_call.1} parent=1 // pred_region
      %19 = vst [vmem:[#allocation2] sm:$0xff] 0.0
    $region17: #{tpu_custom_call.1} parent=1 // pred_fallthru
      _
    %v20 = vld [vmem:[%s1] sm:$0xff]
    %v21 = vld [vmem:[%s2] sm:$0xff]
    %v22 = vsub.f32 %v20, %v21
    %v23 = vmul.f32 %v22, %v22
    %v24 = vadd.f32 %v23, 0.0
    %v25 = vld [vmem:[%s0] sm:$0xff]
    %27 = vset.pattern.permute.xlu0 0
    %28 = vperm.xlu0 %27, %v25
    %v29 = vpop.permute.xlu0 %28
    %v31 = vmul.f32 %v24, %v29
    %v32 = vadd.f32 %v31, 0.0
    %v33 = vld [vmem:[#allocation2] sm:$0xff]
    %v34 = vadd.f32 %v33, %v32
    %35 = vst [vmem:[#allocation2] sm:$0xff] %v34
    // Predicated region
    $region18: #{tpu_custom_call.1} parent=1 // pred_check
      _
    $region19: #{tpu_custom_call.1} parent=1 // pred_check_branch
      %37 = sbr.rel (0) target = $region21
    $region20: #{tpu_custom_call.1} parent=1 // pred_region
      %s39 = ssub.s32 128, 128
      %40 = vsyncadd [#allocation3], %s39
      %s42 = sshll.u32 [#allocation2], 4
      %s43 = int_to_ptr.vmem [resolvable:$true] %s42
      %45 = dma.vmem_to_hbm [thread:$0]  %s43, 128, %s3, [#allocation3]
    $region21: #{tpu_custom_call.1} parent=1 // pred_fallthru
      _
    // Predicated region
    $region22: #{tpu_custom_call.1} parent=1 // pred_check
      _
    $region23: #{tpu_custom_call.1} parent=1 // pred_check_branch
      %47 = sbr.rel (0) target = $region25
    $region24: #{tpu_custom_call.1} parent=1 // pred_region
      %48 = dma.done [#allocation3], 128
    $region25: #{tpu_custom_call.1} parent=1 // pred_fallthru
      _
    %49 = vsyncpa [#allocation3], 1

</llo_original>
